<compile_context>
chip_gen: v5e
topology: v5e:2x2
jax: 0.10.0
libtpu: 0.0.40
codegen_flags: <defaults>
</compile_context>

<pallas_src>
import functools
import math

import jax
import jax.numpy as jnp
from jax import lax
from jax.experimental import pallas as pl
from jax.experimental.pallas import tpu as pltpu


def _round_up(a, b):
    return (a + b - 1) // b * b


def _mix32(x):
    """lowbias32 integer hash on int32 (logical shifts emulated with masks)."""
    x = x ^ ((x >> 16) & jnp.int32(0xFFFF))
    x = x * jnp.int32(0x7FEB352D)
    x = x ^ ((x >> 15) & jnp.int32(0x1FFFF))
    x = x * jnp.int32(-2073581941)          # 0x846CA68B as int32
    x = x ^ ((x >> 16) & jnp.int32(0xFFFF))
    return x


def _bits_to_unit(x):
    """23 random mantissa bits -> float32 in [1, 2) via bit trick (no convert)."""
    m = ((x >> 9) & jnp.int32(0x007FFFFF)) | jnp.int32(0x3F800000)
    return lax.bitcast_convert_type(m, jnp.float32)


def _gaussian_noise_kernel(seed_ref, x_ref, o_ref, *, stddev, block_rows):
    half = block_rows // 2
    seed = seed_ref[0]                                   # int32 scalar (SMEM)

    # Globally unique pair index per element -> noise decorrelated across
    # tiles and across TensorCores (v7x) regardless of the tiling chosen.
    base = pl.program_id(0) * (half * 128)
    row = lax.broadcasted_iota(jnp.int32, (half, 128), 0)
    lane = lax.broadcasted_iota(jnp.int32, (half, 128), 1)
    pair = base + row * 128 + lane

    seed_mix = seed * jnp.int32(-1640531527)             # seed * 0x9E3779B9
    c1 = pair * 2 + seed_mix                             # even counters
    c2 = c1 + 1                                          # odd counters

    bits1 = _mix32(c1)
    bits2 = _mix32(c2)

    u1 = jnp.float32(2.0) - _bits_to_unit(bits1)         # (0, 1]  (log-safe)
    u2 = _bits_to_unit(bits2) - jnp.float32(1.0)         # [0, 1)

    # Box-Muller: use BOTH outputs (cos -> first half rows, sin -> second).
    r = jnp.sqrt(jnp.float32(-2.0) * jnp.log(u1))
    theta = jnp.float32(2.0 * math.pi) * u2
    z_cos = r * jnp.cos(theta)
    z_sin = r * jnp.sin(theta)

    s = jnp.float32(stddev)
    x_lo = x_ref[pl.ds(0, half), :]
    x_hi = x_ref[pl.ds(half, half), :]
    o_ref[pl.ds(0, half), :] = x_lo + s * z_cos
    o_ref[pl.ds(half, half), :] = x_hi + s * z_sin


def gaussian_noise(x, *, stddev=0.1, seed=0, training=True):
    """Forward pass of GaussianNoise. Returns float32 (f64 unsupported on TPU)."""
    x32 = x.astype(jnp.float32)
    if not training:
        return x32

    orig_shape = x32.shape
    n = x32.size
    flat = x32.reshape(-1)

    # Lane-pad only to a multiple of 128 so the slab is (rows, 128); no-op for
    # typical conv activations whose size is already a multiple of 128.
    pad = (-n) % 128
    if pad:
        flat = jnp.pad(flat, (0, pad))
    rows = flat.shape[0] // 128
    x2d = flat.reshape(rows, 128)

    # Tile: up to 1024 rows (512 KiB f32 per buffer); double-buffered in + out
    # stays ~2 MiB, comfortably within VMEM on v5e / v6e / v7x.
    block_rows = min(1024, _round_up(rows, 16))
    grid = (pl.cdiv(rows, block_rows),)

    seed_arr = jnp.array([seed], dtype=jnp.int32)
    kernel = functools.partial(
        _gaussian_noise_kernel, stddev=float(stddev), block_rows=block_rows)

    out2d = pl.pallas_call(
        kernel,
        out_shape=jax.ShapeDtypeStruct((rows, 128), jnp.float32),
        grid_spec=pltpu.PrefetchScalarGridSpec(
            num_scalar_prefetch=1,          # seed lands in SMEM
            grid=grid,
            in_specs=[pl.BlockSpec((block_rows, 128), lambda i, seed: (i, 0))],
            out_specs=pl.BlockSpec((block_rows, 128), lambda i, seed: (i, 0)),
        ),
        compiler_params=pltpu.CompilerParams(
            dimension_semantics=("parallel",)),   # shards across TCs on v7x
    )(seed_arr, x2d)

    out = out2d.reshape(-1)
    if pad:
        out = out[:n]
    return out.reshape(orig_shape)


if __name__ == "__main__":
    key = jax.random.PRNGKey(0)
    # Small NCHW input consistent with a conv-style forward.
    x = jax.random.normal(key, (2, 4, 16, 16), dtype=jnp.float32)

    # Training path: input + N(0, stddev^2) noise.
    y_train = gaussian_noise(x, stddev=0.1, seed=0, training=True)
    y_train = jax.block_until_ready(y_train)

    # Eval path: pass-through (cast).
    y_eval = gaussian_noise(x, stddev=0.1, seed=0, training=False)
    y_eval = jax.block_until_ready(y_eval)

    assert y_train.shape == x.shape and y_train.dtype == jnp.float32
    assert y_eval.shape == x.shape
    assert bool(jnp.all(jnp.isfinite(y_train)))
    assert bool(jnp.allclose(y_eval, x))

    diff = y_train - x
    # Noise must be nonzero, small (stddev=0.1), and roughly the right scale.
    assert float(jnp.max(jnp.abs(diff))) > 0.0
    assert float(jnp.max(jnp.abs(diff))) < 1.0
    d_std = float(jnp.std(diff))
    assert 0.05 < d_std < 0.2, d_std

    print("KERNEL_OK")
</pallas_src>

<mosaic_0001>
module attributes {stable_mosaic.version = 11 : i64} {
  func.func @_gaussian_noise_kernel(%arg0: i32, %arg1: memref<1xi32, #tpu.memory_space<smem>>, %arg2: memref<16x128xf32, #tpu.memory_space<vmem>>, %arg3: memref<16x128xf32, #tpu.memory_space<vmem>>) attributes {dimension_semantics = [#tpu.dimension_semantics<parallel>], iteration_bounds = array<i64: 1>, scalar_prefetch = 1 : i64, scratch_operands = 0 : i64, tpu.core_type = #tpu.core_type<tc>, window_params = [{transform_indices = @transform_0, window_bounds = array<i64: 16, 128>}, {transform_indices = @transform_1, window_bounds = array<i64: 16, 128>}]} {
    %c0 = arith.constant 0 : index
    %0 = memref.load %arg1[%c0] : memref<1xi32, #tpu.memory_space<smem>>
    %c1024_i32 = arith.constant 1024 : i32
    %1 = arith.muli %arg0, %c1024_i32 : i32
    %2 = tpu.iota {dimensions = array<i32: 0>} : vector<8x128xi32>
    %3 = tpu.iota {dimensions = array<i32: 1>} : vector<8x128xi32>
    %c128_i32 = arith.constant 128 : i32
    %4 = vector.broadcast %c128_i32 : i32 to vector<8x128xi32>
    %5 = arith.muli %2, %4 : vector<8x128xi32>
    %6 = vector.broadcast %1 : i32 to vector<8x128xi32>
    %7 = arith.addi %6, %5 : vector<8x128xi32>
    %8 = arith.addi %7, %3 : vector<8x128xi32>
    %c-1640531527_i32 = arith.constant -1640531527 : i32
    %9 = arith.muli %0, %c-1640531527_i32 : i32
    %c2_i32 = arith.constant 2 : i32
    %10 = vector.broadcast %c2_i32 : i32 to vector<8x128xi32>
    %11 = arith.muli %8, %10 : vector<8x128xi32>
    %12 = vector.broadcast %9 : i32 to vector<8x128xi32>
    %13 = arith.addi %11, %12 : vector<8x128xi32>
    %c1_i32 = arith.constant 1 : i32
    %14 = vector.broadcast %c1_i32 : i32 to vector<8x128xi32>
    %15 = arith.addi %13, %14 : vector<8x128xi32>
    %c16_i32 = arith.constant 16 : i32
    %16 = vector.broadcast %c16_i32 : i32 to vector<8x128xi32>
    %17 = arith.shrsi %13, %16 : vector<8x128xi32>
    %c65535_i32 = arith.constant 65535 : i32
    %18 = vector.broadcast %c65535_i32 : i32 to vector<8x128xi32>
    %19 = arith.andi %17, %18 : vector<8x128xi32>
    %20 = arith.xori %13, %19 : vector<8x128xi32>
    %c2146121005_i32 = arith.constant 2146121005 : i32
    %21 = vector.broadcast %c2146121005_i32 : i32 to vector<8x128xi32>
    %22 = arith.muli %20, %21 : vector<8x128xi32>
    %c15_i32 = arith.constant 15 : i32
    %23 = vector.broadcast %c15_i32 : i32 to vector<8x128xi32>
    %24 = arith.shrsi %22, %23 : vector<8x128xi32>
    %c131071_i32 = arith.constant 131071 : i32
    %25 = vector.broadcast %c131071_i32 : i32 to vector<8x128xi32>
    %26 = arith.andi %24, %25 : vector<8x128xi32>
    %27 = arith.xori %22, %26 : vector<8x128xi32>
    %c-2073581941_i32 = arith.constant -2073581941 : i32
    %28 = vector.broadcast %c-2073581941_i32 : i32 to vector<8x128xi32>
    %29 = arith.muli %27, %28 : vector<8x128xi32>
    %c16_i32_0 = arith.constant 16 : i32
    %30 = vector.broadcast %c16_i32_0 : i32 to vector<8x128xi32>
    %31 = arith.shrsi %29, %30 : vector<8x128xi32>
    %c65535_i32_1 = arith.constant 65535 : i32
    %32 = vector.broadcast %c65535_i32_1 : i32 to vector<8x128xi32>
    %33 = arith.andi %31, %32 : vector<8x128xi32>
    %34 = arith.xori %29, %33 : vector<8x128xi32>
    %c16_i32_2 = arith.constant 16 : i32
    %35 = vector.broadcast %c16_i32_2 : i32 to vector<8x128xi32>
    %36 = arith.shrsi %15, %35 : vector<8x128xi32>
    %c65535_i32_3 = arith.constant 65535 : i32
    %37 = vector.broadcast %c65535_i32_3 : i32 to vector<8x128xi32>
    %38 = arith.andi %36, %37 : vector<8x128xi32>
    %39 = arith.xori %15, %38 : vector<8x128xi32>
    %c2146121005_i32_4 = arith.constant 2146121005 : i32
    %40 = vector.broadcast %c2146121005_i32_4 : i32 to vector<8x128xi32>
    %41 = arith.muli %39, %40 : vector<8x128xi32>
    %c15_i32_5 = arith.constant 15 : i32
    %42 = vector.broadcast %c15_i32_5 : i32 to vector<8x128xi32>
    %43 = arith.shrsi %41, %42 : vector<8x128xi32>
    %c131071_i32_6 = arith.constant 131071 : i32
    %44 = vector.broadcast %c131071_i32_6 : i32 to vector<8x128xi32>
    %45 = arith.andi %43, %44 : vector<8x128xi32>
    %46 = arith.xori %41, %45 : vector<8x128xi32>
    %c-2073581941_i32_7 = arith.constant -2073581941 : i32
    %47 = vector.broadcast %c-2073581941_i32_7 : i32 to vector<8x128xi32>
    %48 = arith.muli %46, %47 : vector<8x128xi32>
    %c16_i32_8 = arith.constant 16 : i32
    %49 = vector.broadcast %c16_i32_8 : i32 to vector<8x128xi32>
    %50 = arith.shrsi %48, %49 : vector<8x128xi32>
    %c65535_i32_9 = arith.constant 65535 : i32
    %51 = vector.broadcast %c65535_i32_9 : i32 to vector<8x128xi32>
    %52 = arith.andi %50, %51 : vector<8x128xi32>
    %53 = arith.xori %48, %52 : vector<8x128xi32>
    %c9_i32 = arith.constant 9 : i32
    %54 = vector.broadcast %c9_i32 : i32 to vector<8x128xi32>
    %55 = arith.shrsi %34, %54 : vector<8x128xi32>
    %c8388607_i32 = arith.constant 8388607 : i32
    %56 = vector.broadcast %c8388607_i32 : i32 to vector<8x128xi32>
    %57 = arith.andi %55, %56 : vector<8x128xi32>
    %c1065353216_i32 = arith.constant 1065353216 : i32
    %58 = vector.broadcast %c1065353216_i32 : i32 to vector<8x128xi32>
    %59 = arith.ori %57, %58 : vector<8x128xi32>
    %60 = tpu.bitcast %59 : vector<8x128xi32> -> vector<8x128xf32>
    %cst = arith.constant 2.000000e+00 : f32
    %61 = vector.broadcast %cst : f32 to vector<8x128xf32>
    %62 = arith.subf %61, %60 : vector<8x128xf32>
    %c9_i32_10 = arith.constant 9 : i32
    %63 = vector.broadcast %c9_i32_10 : i32 to vector<8x128xi32>
    %64 = arith.shrsi %53, %63 : vector<8x128xi32>
    %c8388607_i32_11 = arith.constant 8388607 : i32
    %65 = vector.broadcast %c8388607_i32_11 : i32 to vector<8x128xi32>
    %66 = arith.andi %64, %65 : vector<8x128xi32>
    %c1065353216_i32_12 = arith.constant 1065353216 : i32
    %67 = vector.broadcast %c1065353216_i32_12 : i32 to vector<8x128xi32>
    %68 = arith.ori %66, %67 : vector<8x128xi32>
    %69 = tpu.bitcast %68 : vector<8x128xi32> -> vector<8x128xf32>
    %cst_13 = arith.constant 1.000000e+00 : f32
    %70 = vector.broadcast %cst_13 : f32 to vector<8x128xf32>
    %71 = arith.subf %69, %70 : vector<8x128xf32>
    %72 = math.log %62 : vector<8x128xf32>
    %cst_14 = arith.constant -2.000000e+00 : f32
    %73 = vector.broadcast %cst_14 : f32 to vector<8x128xf32>
    %74 = arith.mulf %73, %72 : vector<8x128xf32>
    %75 = math.sqrt %74 : vector<8x128xf32>
    %cst_15 = arith.constant 6.28318548 : f32
    %76 = vector.broadcast %cst_15 : f32 to vector<8x128xf32>
    %77 = arith.mulf %76, %71 : vector<8x128xf32>
    %78 = math.cos %77 : vector<8x128xf32>
    %79 = arith.mulf %75, %78 : vector<8x128xf32>
    %80 = math.sin %77 : vector<8x128xf32>
    %81 = arith.mulf %75, %80 : vector<8x128xf32>
    %c0_16 = arith.constant 0 : index
    %c0_17 = arith.constant 0 : index
    %82 = vector.load %arg2[%c0_16, %c0_17] : memref<16x128xf32, #tpu.memory_space<vmem>>, vector<8x128xf32>
    %c8 = arith.constant 8 : index
    %c0_18 = arith.constant 0 : index
    %83 = vector.load %arg2[%c8, %c0_18] : memref<16x128xf32, #tpu.memory_space<vmem>>, vector<8x128xf32>
    %cst_19 = arith.constant 1.000000e-01 : f32
    %84 = vector.broadcast %cst_19 : f32 to vector<8x128xf32>
    %85 = arith.mulf %84, %79 : vector<8x128xf32>
    %86 = arith.addf %82, %85 : vector<8x128xf32>
    %c0_20 = arith.constant 0 : index
    %c0_21 = arith.constant 0 : index
    %87 = vector.load %arg3[%c0_20, %c0_21] : memref<16x128xf32, #tpu.memory_space<vmem>>, vector<8x128xf32>
    tpu.vector_store %arg3[%c0_20, %c0_21], %86 {strides = array<i32>} : memref<16x128xf32, #tpu.memory_space<vmem>>, vector<8x128xf32>,
    %cst_22 = arith.constant 1.000000e-01 : f32
    %88 = vector.broadcast %cst_22 : f32 to vector<8x128xf32>
    %89 = arith.mulf %88, %81 : vector<8x128xf32>
    %90 = arith.addf %83, %89 : vector<8x128xf32>
    %c8_23 = arith.constant 8 : index
    %c0_24 = arith.constant 0 : index
    %91 = vector.load %arg3[%c8_23, %c0_24] : memref<16x128xf32, #tpu.memory_space<vmem>>, vector<8x128xf32>
    tpu.vector_store %arg3[%c8_23, %c0_24], %90 {strides = array<i32>} : memref<16x128xf32, #tpu.memory_space<vmem>>, vector<8x128xf32>,
    return
  }
  func.func @transform_0(%arg0: i32, %arg1: memref<1xi32, #tpu.memory_space<smem>>) -> (i32, i32) {
    %c0_i32 = arith.constant 0 : i32
    %c0_i32_0 = arith.constant 0 : i32
    return %arg0, %c0_i32 : i32, i32
  }
  func.func @transform_1(%arg0: i32, %arg1: memref<1xi32, #tpu.memory_space<smem>>) -> (i32, i32) {
    %c0_i32 = arith.constant 0 : i32
    %c0_i32_0 = arith.constant 0 : i32
    return %arg0, %c0_i32 : i32, i32
  }
}

</mosaic_0001>

<llo_original>
// kernel: tpu_custom_call.1
$region0: #{tpu_custom_call.1}
  #allocation0 [shape = 'u32[]', space=smem, size = 0x4, offset = 0x4, fixed_abs, tag = 'smem constant byte address 0x4 - core index']
  #allocation1 [shape = 'u32[72,128]{1,0:T(1,128)}', space=vmem, size = 0x9000, scoped, tag = 'internal scratch']
  #allocation2 [shape = 's32[1]{0}', space=sflag, size = 0x4, scoped, tag = 'scoped memory for tpu_custom_call.1']
  #allocation3 [shape = 's32[1]{0:T(128)S(6)}', space=smem, size = 0x200, scoped, tag = 'prefetched SMEM operand 0']
  %s0 = inlined_call_operand.<no memory space> [shape: s32[1], index: 0, kind: input, shape index: {}]
  %s1 = inlined_call_operand.hbm [shape: f32[16,128], index: 1, kind: input, shape index: {}]
  %s2 = inlined_call_operand.hbm [shape: f32[16,128], index: 2, kind: output, shape index: {}]
  %s3 = sld [smem:[#allocation0]]
  $region18: #{tpu_custom_call.1} parent=0
    _
  %s5 = ssub.s32 1, %s3
  %s6 = scalar_select 0, %s5, %s3
  %7 = sst [smem:[#allocation3]] %s0
  $region1: #{tpu_custom_call.1} parent=0
    #allocation4 [shape = 'u8[8192]{0}', space=vmem, size = 0x2000, scoped, tag = 'input window, operand 1, single buffered']
    #allocation5 [shape = 's32[1]{0}', space=sflag, size = 0x4, scoped, tag = 'scoped memory for tpu_custom_call.1']
    #allocation6 [shape = 's32[1]{0}', space=sflag, size = 0x4, scoped, tag = 'scoped memory for tpu_custom_call.1']
    #allocation7 [shape = 'u8[8192]{0}', space=vmem, size = 0x2000, scoped, tag = 'output window, operand 0, single buffered']
    %8 = vsyncpa [#allocation5], 0
    %9 = vsyncpa [#allocation6], 0
    // Predicated region
    $region2: #{tpu_custom_call.1} parent=1 // pred_check
      _
    $region3: #{tpu_custom_call.1} parent=1 // pred_check_branch
      %11 = sbr.rel (0) target = $region5
    $region4: #{tpu_custom_call.1} parent=1 // pred_region
      %13 = vsyncadd [#allocation5], 0
      %s14 = sshll.u32 %s1, 4
      %s15 = int_to_ptr.hbm [resolvable:$true] %s14
      %s16 = sshll.u32 [#allocation4], 4
      %s17 = int_to_ptr.vmem [resolvable:$true] %s16
      %22 = dma.hbm_to_vmem [thread:$0]  %s15, 256, %s17, [#allocation5], 128, 128, 8
    $region5: #{tpu_custom_call.1} parent=1 // pred_fallthru
      _
    // Predicated region
    $region6: #{tpu_custom_call.1} parent=1 // pred_check
      _
    $region7: #{tpu_custom_call.1} parent=1 // pred_check_branch
      %24 = sbr.rel (0) target = $region9
    $region8: #{tpu_custom_call.1} parent=1 // pred_region
      %26 = dma.done [#allocation5], 256
    $region9: #{tpu_custom_call.1} parent=1 // pred_fallthru
      _
    %s27 = sld [smem:[#allocation3]]
    %s28 = smul.u32 0, 1024
    %v29 = vlaneseq
    %v30 = vshrl.u32 %v29, 7
    %v31 = vlaneseq
    %v32 = vand.u32 %v31, 127
    %v33 = vmul.u32 %v30, 128
    %v34 = vstv %s28
    %v35 = vadd.s32 %v34, %v33
    %v36 = vadd.s32 %v35, %v32
    %s37 = smul.u32 %s27, 2654435769
    %v38 = vmul.u32 %v36, 2
    %v39 = vstv %s37
    %v40 = vadd.s32 %v38, %v39
    %v41 = vadd.s32 %v40, 1
    %v42 = vshra.s32 %v40, 16
    %v43 = vand.u32 %v42, 65535
    %v44 = vxor.u32 %v40, %v43
    %v45 = vmul.u32 %v44, 2146121005
    %v46 = vshra.s32 %v45, 15
    %v47 = vand.u32 %v46, 131071
    %v48 = vxor.u32 %v45, %v47
    %v49 = vmul.u32 %v48, 2221385355
    %v50 = vshra.s32 %v49, 16
    %v51 = vand.u32 %v50, 65535
    %v52 = vxor.u32 %v49, %v51
    %v53 = vshra.s32 %v41, 16
    %v54 = vand.u32 %v53, 65535
    %v55 = vxor.u32 %v41, %v54
    %v56 = vmul.u32 %v55, 2146121005
    %v57 = vshra.s32 %v56, 15
    %v58 = vand.u32 %v57, 131071
    %v59 = vxor.u32 %v56, %v58
    %v60 = vmul.u32 %v59, 2221385355
    %v61 = vshra.s32 %v60, 16
    %v62 = vand.u32 %v61, 65535
    %v63 = vxor.u32 %v60, %v62
    %v64 = vshra.s32 %v52, 9
    %v65 = vand.u32 %v64, 8388607
    %v66 = vor.u32 %v65, 1065353216
    %v68 = vsub.f32 2.0, %v66
    %v69 = vshra.s32 %v63, 9
    %v70 = vand.u32 %v69, 8388607
    %v71 = vor.u32 %v70, 1065353216
    %v73 = vsub.f32 %v71, 1.0
    %v74 = vlog2.pop %v68
    %v75 = vmul.f32 %v74, 0.6931472
    %v76 = vmul.f32 %v75, -2.0
    %v77 = vrsqrt.pop %v76
    %v78 = vmul.f32 %v77, %v76
    %v79 = vmul.f32 %v78, %v77
    %v80 = vmul.f32 0.5, %v79
    %v81 = vsub.f32 1.5, %v80
    %v82 = vmul.f32 %v77, %v81
    %v83 = vmul.f32 %v76, %v82
    %vm84 = vcmp.eq.f32.partialorder %v76, inf
    %v85 = vsel %vm84, %v76, %v83
    %vm86 = vcmp.eq.f32.partialorder %v76, 0.0
    %v87 = vand.u32 %v76, 2147483648
    %v88 = vsel %vm86, %v87, %v85
    %v89 = vmul.f32 %v73, 6.2831855
    %v90 = vand.u32 2147483647, %v89
    %vm91 = vcmp.le.f32.partialorder %v90, 0.7853982
    %vm92 = vcmp.lt.s32.totalorder %v89, 0
    %v93 = vand.u32 %v89, 2139095040
    %v94 = vshrl.u32 %v93, 23
    %v95 = vsub.s32 %v94, 127
    %v96 = vand.u32 2147483647, %v89
    %v97 = vand.u32 %v96, 8388607
    %v98 = vor.u32 %v97, 8388608
    %v99 = vsub.s32 0, %v98
    %v100 = vadd.s32 %v95, 1
    %vm101 = vcmp.gt.s32.totalorder %v100, 0
    %v102 = vsel %vm101, %v100, 0
    %v103 = vshrl.u32 %v102, 5
    %v104 = vand.u32 %v102, 31
    %v105 = vsub.s32 32, %v104
    %v106 = vshrl.u32 683565275, %v105
    %v107 = vshll.u32 683565275, %v104
    %v108 = vshrl.u32 2475754826, %v105
    %v109 = vor.u32 %v107, %v108
    %v110 = vshll.u32 2475754826, %v104
    %v111 = vshrl.u32 2131351028, %v105
    %v112 = vor.u32 %v110, %v111
    %v113 = vshll.u32 2131351028, %v104
    %v114 = vshrl.u32 2102212464, %v105
    %v115 = vor.u32 %v113, %v114
    %v116 = vshll.u32 2102212464, %v104
    %v117 = vshrl.u32 920167782, %v105
    %v118 = vor.u32 %v116, %v117
    %v119 = vshll.u32 920167782, %v104
    %v120 = vshrl.u32 1326507024, %v105
    %v121 = vor.u32 %v119, %v120
    %vm122 = vcmp.lt.s32.totalorder %v103, 1
    %vm123 = vcmp.lt.s32.totalorder %v103, 2
    %vm124 = vcmp.lt.s32.totalorder %v103, 3
    %vm125 = vcmp.lt.s32.totalorder %v103, 4
    %v126 = vsel %vm122, %v106, %v109
    %v127 = vsel %vm125, %v115, 2102212464
    %v128 = vsel %vm124, %v112, %v127
    %v129 = vsel %vm123, %v126, %v128
    %v130 = vsel %vm122, %v109, %v112
    %v131 = vsel %vm125, %v118, 920167782
    %v132 = vsel %vm124, %v115, %v131
    %v133 = vsel %vm123, %v130, %v132
    %v134 = vsel %vm122, %v112, %v115
    %v135 = vsel %vm125, %v121, 1326507024
    %v136 = vsel %vm124, %v118, %v135
    %v137 = vsel %vm123, %v134, %v136
    %v138 = vshll.u32 %v98, 8
    %v139 = vand.u32 %v138, 65535
    %v140 = vshrl.u32 %v138, 16
    %v141 = vand.u32 %v137, 65535
    %v142 = vshrl.u32 %v137, 16
    %v143 = vmul.u32 %v139, %v141
    %v144 = vmul.u32 %v139, %v142
    %v145 = vmul.u32 %v140, %v141
    %v146 = vmul.u32 %v140, %v142
    %v147 = vshll.u32 %v144, 16
    %v148 = vshrl.u32 %v144, 16
    %v149 = vshll.u32 %v145, 16
    %v150 = vshrl.u32 %v145, 16
    %vm151 = vc.u32 %v143, %v147
    %v152 = vsel %vm151, 1, 0
    %v153 = vadd.s32 %v143, %v147
    %v154 = vadd.s32 %v146, %v152
    %vm155 = vc.u32 %v153, %v149
    %v156 = vsel %vm155, 1, 0
    %v157 = vadd.s32 %v153, %v149
    %v158 = vadd.s32 %v154, %v156
    %v159 = vadd.s32 %v158, %v148
    %v160 = vadd.s32 %v159, %v150
    %v161 = vand.u32 %v138, 65535
    %v162 = vshrl.u32 %v138, 16
    %v163 = vand.u32 %v133, 65535
    %v164 = vshrl.u32 %v133, 16
    %v165 = vmul.u32 %v161, %v163
    %v166 = vmul.u32 %v161, %v164
    %v167 = vmul.u32 %v162, %v163
    %v168 = vmul.u32 %v162, %v164
    %v169 = vshll.u32 %v166, 16
    %v170 = vshrl.u32 %v166, 16
    %v171 = vshll.u32 %v167, 16
    %v172 = vshrl.u32 %v167, 16
    %vm173 = vc.u32 %v165, %v169
    %v174 = vsel %vm173, 1, 0
    %v175 = vadd.s32 %v165, %v169
    %v176 = vadd.s32 %v168, %v174
    %vm177 = vc.u32 %v175, %v171
    %v178 = vsel %vm177, 1, 0
    %v179 = vadd.s32 %v175, %v171
    %v180 = vadd.s32 %v176, %v178
    %v181 = vadd.s32 %v180, %v170
    %v182 = vadd.s32 %v181, %v172
    %v183 = vmul.u32 %v138, %v129
    %v184 = vadd.s32 %v160, %v179
    %vm185 = vc.u32 %v160, %v179
    %v186 = vadd.s32 %v182, 1
    %v187 = vsel %vm185, %v186, %v182
    %v188 = vadd.s32 %v183, %v187
    %v189 = vadd.s32 %v188, 536870912
    %v190 = vshrl.u32 %v189, 30
    %v191 = vshll.u32 %v190, 30
    %v192 = vsub.s32 %v188, %v191
    %vm193 = vcmp.lt.s32.totalorder %v192, 0
    %v194 = vsub.s32 0, %v192
    %v195 = vsel %vm193, %v194, %v192
    %v196 = vclz %v195
    %v197 = vsub.s32 %v196, 2
    %vm198 = vcmp.gt.s32.totalorder 0, %v197
    %v199 = vsel %vm198, 0, %v197
    %v200 = vsub.s32 32, %v199
    %v201 = vshll.u32 %v192, %v199
    %v202 = vshrl.u32 %v184, %v200
    %v203 = vor.u32 %v201, %v202
    %v204 = vsub.s32 4294967266, %v199
    %v205 = vadd.s32 %v204, 127
    %v206 = vshll.u32 %v205, 23
    %v207 = vor.u32 4788187, %v206
    %v208 = vand.u32 2147483647, %v207
    %v210 = vcvt.s32.f32 %v203
    %v211 = vmul.f32 %v210, %v208
    %v212 = vxor.u32 %v211, 2147483648
    %v213 = vsel %vm92, %v212, %v211
    %v214 = vsub.s32 4, %v190
    %v215 = vsel %vm92, %v214, %v190
    %v216 = vsel %vm91, %v89, %v213
    %v217 = vsel %vm91, 0, %v215
    %v218 = vmul.f32 %v216, %v216
    %v219 = vmul.f32 %v218, -0.001358992
    %v220 = vadd.f32 %v219, 0.041655596
    %v221 = vmul.f32 %v218, %v220
    %v222 = vadd.f32 %v221, -0.4999988
    %v223 = vmul.f32 %v218, %v222
    %v224 = vadd.f32 1.0, %v223
    %v225 = vmul.f32 %v216, %v216
    %v226 = vmul.f32 %v225, -0.00019511016
    %v227 = vadd.f32 %v226, 0.008332121
    %v228 = vmul.f32 %v225, %v227
    %v229 = vadd.f32 %v228, -0.16666654
    %v230 = vmul.f32 %v225, %v229
    %v231 = vadd.f32 %v230, 1.0
    %v232 = vmul.f32 %v231, %v216
    %vm233 = vweird.f32 %v89
    %v234 = vand.u32 %v217, 3
    %vm235 = vcmp.lt.s32.totalorder %v234, 2
    %vm236 = vcmp.eq.s32.totalorder %v234, 0
    %v237 = vxor.u32 %v232, 2147483648
    %v238 = vsel %vm236, %v224, %v237
    %vm239 = vcmp.eq.s32.totalorder %v234, 2
    %v240 = vxor.u32 %v224, 2147483648
    %v241 = vsel %vm239, %v240, %v232
    %v242 = vsel %vm235, %v238, %v241
    %v243 = vsel %vm233, nan, %v242
    %v244 = vmul.f32 %v88, %v243
    %v245 = vand.u32 2147483647, %v89
    %vm246 = vcmp.le.f32.partialorder %v245, 0.7853982
    %vm247 = vcmp.lt.s32.totalorder %v89, 0
    %v248 = vand.u32 %v89, 2139095040
    %v249 = vshrl.u32 %v248, 23
    %v250 = vsub.s32 %v249, 127
    %v251 = vand.u32 2147483647, %v89
    %v252 = vand.u32 %v251, 8388607
    %v253 = vor.u32 %v252, 8388608
    %v254 = vsub.s32 0, %v253
    %v255 = vadd.s32 %v250, 1
    %vm256 = vcmp.gt.s32.totalorder %v255, 0
    %v257 = vsel %vm256, %v255, 0
    %v258 = vshrl.u32 %v257, 5
    %v259 = vand.u32 %v257, 31
    %v260 = vsub.s32 32, %v259
    %v261 = vshrl.u32 683565275, %v260
    %v262 = vshll.u32 683565275, %v259
    %v263 = vshrl.u32 2475754826, %v260
    %v264 = vor.u32 %v262, %v263
    %v265 = vshll.u32 2475754826, %v259
    %v266 = vshrl.u32 2131351028, %v260
    %v267 = vor.u32 %v265, %v266
    %v268 = vshll.u32 2131351028, %v259
    %v269 = vshrl.u32 2102212464, %v260
    %v270 = vor.u32 %v268, %v269
    %v271 = vshll.u32 2102212464, %v259
    %v272 = vshrl.u32 920167782, %v260
    %v273 = vor.u32 %v271, %v272
    %v274 = vshll.u32 920167782, %v259
    %v275 = vshrl.u32 1326507024, %v260
    %v276 = vor.u32 %v274, %v275
    %vm277 = vcmp.lt.s32.totalorder %v258, 1
    %vm278 = vcmp.lt.s32.totalorder %v258, 2
    %vm279 = vcmp.lt.s32.totalorder %v258, 3
    %vm280 = vcmp.lt.s32.totalorder %v258, 4
    %v281 = vsel %vm277, %v261, %v264
    %v282 = vsel %vm280, %v270, 2102212464
    %v283 = vsel %vm279, %v267, %v282
    %v284 = vsel %vm278, %v281, %v283
    %v285 = vsel %vm277, %v264, %v267
    %v286 = vsel %vm280, %v273, 920167782
    %v287 = vsel %vm279, %v270, %v286
    %v288 = vsel %vm278, %v285, %v287
    %v289 = vsel %vm277, %v267, %v270
    %v290 = vsel %vm280, %v276, 1326507024
    %v291 = vsel %vm279, %v273, %v290
    %v292 = vsel %vm278, %v289, %v291
    %v293 = vshll.u32 %v253, 8
    %v294 = vand.u32 %v293, 65535
    %v295 = vshrl.u32 %v293, 16
    %v296 = vand.u32 %v292, 65535
    %v297 = vshrl.u32 %v292, 16
    %v298 = vmul.u32 %v294, %v296
    %v299 = vmul.u32 %v294, %v297
    %v300 = vmul.u32 %v295, %v296
    %v301 = vmul.u32 %v295, %v297
    %v302 = vshll.u32 %v299, 16
    %v303 = vshrl.u32 %v299, 16
    %v304 = vshll.u32 %v300, 16
    %v305 = vshrl.u32 %v300, 16
    %vm306 = vc.u32 %v298, %v302
    %v307 = vsel %vm306, 1, 0
    %v308 = vadd.s32 %v298, %v302
    %v309 = vadd.s32 %v301, %v307
    %vm310 = vc.u32 %v308, %v304
    %v311 = vsel %vm310, 1, 0
    %v312 = vadd.s32 %v308, %v304
    %v313 = vadd.s32 %v309, %v311
    %v314 = vadd.s32 %v313, %v303
    %v315 = vadd.s32 %v314, %v305
    %v316 = vand.u32 %v293, 65535
    %v317 = vshrl.u32 %v293, 16
    %v318 = vand.u32 %v288, 65535
    %v319 = vshrl.u32 %v288, 16
    %v320 = vmul.u32 %v316, %v318
    %v321 = vmul.u32 %v316, %v319
    %v322 = vmul.u32 %v317, %v318
    %v323 = vmul.u32 %v317, %v319
    %v324 = vshll.u32 %v321, 16
    %v325 = vshrl.u32 %v321, 16
    %v326 = vshll.u32 %v322, 16
    %v327 = vshrl.u32 %v322, 16
    %vm328 = vc.u32 %v320, %v324
    %v329 = vsel %vm328, 1, 0
    %v330 = vadd.s32 %v320, %v324
    %v331 = vadd.s32 %v323, %v329
    %vm332 = vc.u32 %v330, %v326
    %v333 = vsel %vm332, 1, 0
    %v334 = vadd.s32 %v330, %v326
    %v335 = vadd.s32 %v331, %v333
    %v336 = vadd.s32 %v335, %v325
    %v337 = vadd.s32 %v336, %v327
    %v338 = vmul.u32 %v293, %v284
    %v339 = vadd.s32 %v315, %v334
    %vm340 = vc.u32 %v315, %v334
    %v341 = vadd.s32 %v337, 1
    %v342 = vsel %vm340, %v341, %v337
    %v343 = vadd.s32 %v338, %v342
    %v344 = vadd.s32 %v343, 536870912
    %v345 = vshrl.u32 %v344, 30
    %v346 = vshll.u32 %v345, 30
    %v347 = vsub.s32 %v343, %v346
    %vm348 = vcmp.lt.s32.totalorder %v347, 0
    %v349 = vsub.s32 0, %v347
    %v350 = vsel %vm348, %v349, %v347
    %v351 = vclz %v350
    %v352 = vsub.s32 %v351, 2
    %vm353 = vcmp.gt.s32.totalorder 0, %v352
    %v354 = vsel %vm353, 0, %v352
    %v355 = vsub.s32 32, %v354
    %v356 = vshll.u32 %v347, %v354
    %v357 = vshrl.u32 %v339, %v355
    %v358 = vor.u32 %v356, %v357
    %v359 = vsub.s32 4294967266, %v354
    %v360 = vadd.s32 %v359, 127
    %v361 = vshll.u32 %v360, 23
    %v362 = vor.u32 4788187, %v361
    %v363 = vand.u32 2147483647, %v362
    %v365 = vcvt.s32.f32 %v358
    %v366 = vmul.f32 %v365, %v363
    %v367 = vxor.u32 %v366, 2147483648
    %v368 = vsel %vm247, %v367, %v366
    %v369 = vsub.s32 4, %v345
    %v370 = vsel %vm247, %v369, %v345
    %v371 = vsel %vm246, %v89, %v368
    %v372 = vsel %vm246, 0, %v370
    %v373 = vmul.f32 %v371, %v371
    %v374 = vmul.f32 %v373, -0.001358992
    %v375 = vadd.f32 %v374, 0.041655596
    %v376 = vmul.f32 %v373, %v375
    %v377 = vadd.f32 %v376, -0.4999988
    %v378 = vmul.f32 %v373, %v377
    %v379 = vadd.f32 1.0, %v378
    %v380 = vmul.f32 %v371, %v371
    %v381 = vmul.f32 %v380, -0.00019511016
    %v382 = vadd.f32 %v381, 0.008332121
    %v383 = vmul.f32 %v380, %v382
    %v384 = vadd.f32 %v383, -0.16666654
    %v385 = vmul.f32 %v380, %v384
    %v386 = vadd.f32 %v385, 1.0
    %v387 = vmul.f32 %v386, %v371
    %vm388 = vweird.f32 %v89
    %v389 = vadd.s32 %v372, 3
    %v390 = vand.u32 %v389, 3
    %vm391 = vcmp.lt.s32.totalorder %v390, 2
    %vm392 = vcmp.eq.s32.totalorder %v390, 0
    %v393 = vxor.u32 %v387, 2147483648
    %v394 = vsel %vm392, %v379, %v393
    %vm395 = vcmp.eq.s32.totalorder %v390, 2
    %v396 = vxor.u32 %v379, 2147483648
    %v397 = vsel %vm395, %v396, %v387
    %v398 = vsel %vm391, %v394, %v397
    %v399 = vsel %vm388, nan, %v398
    %v400 = vmul.f32 %v88, %v399
    %v401 = vld [vmem:[#allocation4] sm:$0xff]
    %v402 = vld [vmem:[#allocation4 + $0x8] sm:$0xff]
    %v403 = vmul.f32 %v244, 0.1
    %v404 = vadd.f32 %v401, %v403
    %405 = vst [vmem:[#allocation7] sm:$0xff] %v404
    %v406 = vmul.f32 %v400, 0.1
    %v407 = vadd.f32 %v402, %v406
    %408 = vst [vmem:[#allocation7 + $0x8] sm:$0xff] %v407
    // Predicated region
    $region10: #{tpu_custom_call.1} parent=1 // pred_check
      _
    $region11: #{tpu_custom_call.1} parent=1 // pred_check_branch
      %410 = sbr.rel (0) target = $region13
    $region12: #{tpu_custom_call.1} parent=1 // pred_region
      %412 = vsyncadd [#allocation6], 0
      %s413 = sshll.u32 [#allocation7], 4
      %s414 = int_to_ptr.vmem [resolvable:$true] %s413
      %s415 = sshll.u32 %s2, 4
      %s416 = int_to_ptr.hbm [resolvable:$true] %s415
      %421 = dma.vmem_to_hbm [thread:$0]  %s414, 256, %s416, [#allocation6], 128, 128, 8
    $region13: #{tpu_custom_call.1} parent=1 // pred_fallthru
      _
    // Predicated region
    $region14: #{tpu_custom_call.1} parent=1 // pred_check
      _
    $region15: #{tpu_custom_call.1} parent=1 // pred_check_branch
      %423 = sbr.rel (0) target = $region17
    $region16: #{tpu_custom_call.1} parent=1 // pred_region
      %425 = dma.done [#allocation6], 256
    $region17: #{tpu_custom_call.1} parent=1 // pred_fallthru
      _
    %426 = vsyncpa [#allocation5], 1
    %427 = vsyncpa [#allocation6], 1

</llo_original>
